<compile_context>
chip_gen: v6e
topology: v6e:2x2x1
jax: 0.10.0
libtpu: 0.0.40
codegen_flags: <defaults>
</compile_context>

<pallas_src>
import functools
import math

import jax
import jax.numpy as jnp
from jax.experimental import pallas as pl
from jax.experimental.pallas import tpu as pltpu

_INV_SQRT2 = 1.0 / math.sqrt(2.0)
_MIB = 1024 * 1024


# --------------------------------------------------------------------------
# Helpers
# --------------------------------------------------------------------------
def _vmem_capacity_bytes():
    """Physical VMEM per TensorCore; conservative 64 MiB fallback (v7x)."""
    try:
        cap = int(pltpu.get_tpu_info().vmem_capacity_bytes)
        if cap > 0:
            return cap
    except Exception:
        pass
    return 64 * _MIB


def _gelu(h, approximate):
    if approximate:
        c = math.sqrt(2.0 / math.pi)
        return 0.5 * h * (1.0 + jnp.tanh(c * (h + 0.044715 * h * h * h)))
    # Exact erf GELU -- matches torch.nn.GELU() default.
    return 0.5 * h * (1.0 + jax.lax.erf(h * _INV_SQRT2))


def _resident_bytes(C, H, tm, hc, x_isz, w_isz, o_isz):
    """VMEM working set for the resident-weight regime."""
    b = (2 * C * H + H + C) * w_isz                 # W1+W2+b1+b2, single-buffered
    b += 2 * tm * C * x_isz + 2 * tm * C * o_isz    # x / out row tiles (2x buffered)
    b += tm * C * 4                                 # f32 result / accumulator carry
    b += tm * hc * (4 + x_isz)                      # GELU intermediate (f32 + cast)
    if hc < H:
        b += 2 * C * hc * w_isz                     # in-kernel weight slice copies
    return b


def _stream_bytes(C, H, tm, tn, x_isz, w_isz, o_isz):
    """VMEM working set for the streaming-weight regime."""
    b = 2 * (C * tn + tn * C + tn) * w_isz + C * w_isz   # W1/W2/b1 chunks (2x), b2 (1x)
    b += 2 * tm * C * x_isz + 2 * tm * C * o_isz         # x / out row tiles
    b += tm * C * 4                                       # f32 accumulator scratch
    b += tm * tn * (4 + x_isz)                            # GELU intermediate (f32 + cast)
    return b


def _plan_tiles(M, C, H, x_isz, w_isz, o_isz, vmem_cap):
    """Pick (mode, tm, tn, hc) so the working set fits ~65% of physical VMEM."""
    budget = int(0.65 * vmem_cap)

    hc_opts = [h for h in (H, 4096, 2048, 1024, 512, 256, 128)
               if h <= H and H % h == 0]
    hc_opts = list(dict.fromkeys(hc_opts))

    # Resident weights (tn == H at BlockSpec level, weights DMA'd exactly once).
    for tm in (256, 128, 64, 32, 16, 8):
        tm_c = min(tm, M)
        for hc in hc_opts:
            if _resident_bytes(C, H, tm_c, hc, x_isz, w_isz, o_isz) <= budget:
                return "resident", tm_c, H, hc
        if tm_c == M:
            break

    # Streaming weights: maximize the row tile first (arithmetic intensity of
    # the streamed weights ~ tm flops/byte; bf16 ridge ~570-620 flops/B on
    # v6e/v7x), then the hidden chunk.
    tn_opts = [t for t in (2048, 1024, 512, 256, 128) if t < H and H % t == 0]
    if not tn_opts:
        tn_opts = [H]
    for tm in (1024, 768, 512, 384, 256, 128, 64, 32, 16, 8):
        tm_c = min(tm, M)
        for tn in tn_opts:
            if _stream_bytes(C, H, tm_c, tn, x_isz, w_isz, o_isz) <= budget:
                return "stream", tm_c, tn, tn
        if tm_c == M and tm_c <= 8:
            break
    return "stream", min(8, M), tn_opts[-1], tn_opts[-1]


# --------------------------------------------------------------------------
# Kernels
# --------------------------------------------------------------------------
def _mlp_kernel_resident(x_ref, w1_ref, b1_ref, w2_ref, b2_ref, o_ref, *,
                         hidden_chunk, num_chunks, approximate_gelu):
    # x_ref: (tm, C)   w1_ref: (C, H)  b1_ref: (1, H)
    # w2_ref: (H, C)   b2_ref: (1, C)  o_ref: (tm, C)
    x = x_ref[...]
    if num_chunks == 1:
        h = jnp.dot(x, w1_ref[...], preferred_element_type=jnp.float32)
        h = h + b1_ref[...].astype(jnp.float32)
        h = _gelu(h, approximate_gelu)
        # dropout1: identity in inference mode.
        acc = jnp.dot(h.astype(w2_ref.dtype), w2_ref[...],
                      preferred_element_type=jnp.float32)
    else:
        # Weights stay resident in VMEM; only the (tm, hidden_chunk) GELU
        # intermediate is materialized per step (caps VMEM on v7x).
        def body(c, acc):
            start = pl.multiple_of(c * hidden_chunk, hidden_chunk)
            w1c = w1_ref[:, pl.ds(start, hidden_chunk)]
            b1c = b1_ref[:, pl.ds(start, hidden_chunk)]
            w2c = w2_ref[pl.ds(start, hidden_chunk), :]
            h = jnp.dot(x, w1c, preferred_element_type=jnp.float32)
            h = h + b1c.astype(jnp.float32)
            h = _gelu(h, approximate_gelu)
            return acc + jnp.dot(h.astype(w2c.dtype), w2c,
                                 preferred_element_type=jnp.float32)

        acc = jax.lax.fori_loop(
            0, num_chunks, body,
            jnp.zeros((x.shape[0], o_ref.shape[1]), jnp.float32))

    # dropout2: identity in inference mode.
    o_ref[...] = (acc + b2_ref[...].astype(jnp.float32)).astype(o_ref.dtype)


def _mlp_kernel_stream(x_ref, w1_ref, b1_ref, w2_ref, b2_ref, o_ref, acc_ref, *,
                       approximate_gelu):
    # x_ref: (tm, C)   w1_ref: (C, tn)  b1_ref: (1, tn)
    # w2_ref: (tn, C)  b2_ref: (1, C)   o_ref: (tm, C)
    # acc_ref: (tm, C) f32 scratch, resident across the hidden (k) axis.
    k = pl.program_id(1)

    @pl.when(k == 0)
    def _init():
        acc_ref[...] = jnp.zeros_like(acc_ref)

    h = jnp.dot(x_ref[...], w1_ref[...], preferred_element_type=jnp.float32)
    h = h + b1_ref[...].astype(jnp.float32)
    h = _gelu(h, approximate_gelu)
    # dropout1: identity in inference mode.
    acc_ref[...] += jnp.dot(h.astype(w2_ref.dtype), w2_ref[...],
                            preferred_element_type=jnp.float32)

    @pl.when(k == pl.num_programs(1) - 1)
    def _finalize():
        # dropout2: identity in inference mode.
        o_ref[...] = (acc_ref[...] + b2_ref[...].astype(jnp.float32)).astype(
            o_ref.dtype)


# --------------------------------------------------------------------------
# Wrapper
# --------------------------------------------------------------------------
def mlp_forward(x, w1, b1, w2, b2, *, approximate_gelu=False,
                _force_mode=None, _force_tm=None, _force_tn=None,
                _force_hc=None):
    """x: [B, T, C].  w1: [C, 4C], b1: [4C], w2: [4C, C], b2: [C]."""
    B, T, C = x.shape
    H = w1.shape[1]
    M = B * T

    x2d = x.reshape(M, C)
    b1_2d = b1.reshape(1, H)
    b2_2d = b2.reshape(1, C)
    out_dtype = x.dtype

    x_isz = jnp.dtype(x.dtype).itemsize
    w_isz = jnp.dtype(w1.dtype).itemsize
    o_isz = jnp.dtype(out_dtype).itemsize

    vmem_cap = _vmem_capacity_bytes()
    mode, tm, tn, hc = _plan_tiles(M, C, H, x_isz, w_isz, o_isz, vmem_cap)

    # Debug / test overrides.
    if _force_mode is not None:
        mode = _force_mode
    if _force_tn is not None:
        tn = _force_tn
    if _force_hc is not None:
        hc = _force_hc
    if _force_tm is not None:
        tm = min(_force_tm, M)
    if mode == "resident":
        tn = H
        if hc > H or H % hc != 0:
            hc = H
    else:
        if H % tn != 0:
            tn = H
        hc = tn
    assert H % tn == 0 and H % hc == 0

    # v7x: make sure the "parallel" row axis has >= 2 tiles so both
    # TensorCores get work (single-tile decode shapes would idle one TC).
    if _force_tm is None and pl.cdiv(M, tm) < 2 and M >= 16:
        tm = max(8, ((M // 2) + 7) // 8 * 8)

    num_row_tiles = pl.cdiv(M, tm)

    # VMEM budget from the actual working set (includes the GELU intermediate),
    # capped at 90% of physical VMEM (v7x has only 64 MiB per TC).
    if mode == "resident":
        working_set = _resident_bytes(C, H, tm, hc, x_isz, w_isz, o_isz)
    else:
        working_set = _stream_bytes(C, H, tm, tn, x_isz, w_isz, o_isz)
    vmem_limit = int(min(0.9 * vmem_cap, max(32 * _MIB, 1.2 * working_set)))

    # Advisory cost: streaming mode re-reads the weights once per row tile.
    if mode == "stream":
        weight_hbm = num_row_tiles * (2 * C * H + H) * w_isz + C * w_isz
    else:
        weight_hbm = (2 * C * H + H + C) * w_isz
    cost = pl.CostEstimate(
        flops=4 * M * C * H,              # two matmuls, 2*M*C*H flops each
        transcendentals=M * H,            # erf / tanh
        bytes_accessed=M * C * x_isz + M * C * o_isz + weight_hbm,
    )

    def _bspec(shape, index_map, single_buffer):
        # Constant-index blocks don't need double buffering: halves their VMEM.
        if single_buffer:
            return pl.BlockSpec(shape, index_map, pipeline_mode=pl.Buffered(1))
        return pl.BlockSpec(shape, index_map)

    def _build(single_buffer):
        if mode == "resident":
            grid = (num_row_tiles,)
            in_specs = [
                pl.BlockSpec((tm, C), lambda i: (i, 0)),            # x row tile
                _bspec((C, H), lambda i: (0, 0), single_buffer),    # W1 (resident)
                _bspec((1, H), lambda i: (0, 0), single_buffer),    # b1 (resident)
                _bspec((H, C), lambda i: (0, 0), single_buffer),    # W2 (resident)
                _bspec((1, C), lambda i: (0, 0), single_buffer),    # b2 (resident)
            ]
            out_specs = pl.BlockSpec((tm, C), lambda i: (i, 0))
            scratch = []
            kern = functools.partial(_mlp_kernel_resident, hidden_chunk=hc,
                                     num_chunks=H // hc,
                                     approximate_gelu=approximate_gelu)
            dims = ("parallel",)
        else:
            grid = (num_row_tiles, H // tn)
            in_specs = [
                pl.BlockSpec((tm, C), lambda i, k: (i, 0)),          # x (over k)
                pl.BlockSpec((C, tn), lambda i, k: (0, k)),          # W1 chunk
                pl.BlockSpec((1, tn), lambda i, k: (0, k)),          # b1 chunk
                pl.BlockSpec((tn, C), lambda i, k: (k, 0)),          # W2 chunk
                _bspec((1, C), lambda i, k: (0, 0), single_buffer),  # b2
            ]
            out_specs = pl.BlockSpec((tm, C), lambda i, k: (i, 0))
            scratch = [pltpu.VMEM((tm, C), jnp.float32)]
            kern = functools.partial(_mlp_kernel_stream,
                                     approximate_gelu=approximate_gelu)
            dims = ("parallel", "arbitrary")

        return pl.pallas_call(
            kern,
            out_shape=jax.ShapeDtypeStruct((M, C), out_dtype),
            grid_spec=pltpu.PrefetchScalarGridSpec(
                num_scalar_prefetch=0,
                grid=grid,
                in_specs=in_specs,
                out_specs=out_specs,
                scratch_shapes=scratch),
            compiler_params=pltpu.CompilerParams(
                dimension_semantics=dims,
                vmem_limit_bytes=vmem_limit),
            cost_estimate=cost,
        )

    try:
        out2d = _build(True)(x2d, w1, b1_2d, w2, b2_2d)
    except Exception:
        # pipeline_mode=pl.Buffered(1) not supported on this jax version:
        # fall back to default double buffering (identical numerics).
        out2d = _build(False)(x2d, w1, b1_2d, w2, b2_2d)

    return out2d.reshape(B, T, C)


# --------------------------------------------------------------------------
# Reference / init / test
# --------------------------------------------------------------------------
def init_params(key, n_embd):
    """Deterministic init mimicking nn.Linear (uniform +/- 1/sqrt(fan_in))."""
    hidden = 4 * n_embd
    k1, k2, k3, k4 = jax.random.split(key, 4)
    bound1 = 1.0 / math.sqrt(n_embd)
    bound2 = 1.0 / math.sqrt(hidden)
    # stored transposed vs. PyTorch: W1 [C, 4C], W2 [4C, C]
    w1 = jax.random.uniform(k1, (n_embd, hidden), jnp.float32, -bound1, bound1)
    b1 = jax.random.uniform(k2, (hidden,), jnp.float32, -bound1, bound1)
    w2 = jax.random.uniform(k3, (hidden, n_embd), jnp.float32, -bound2, bound2)
    b2 = jax.random.uniform(k4, (n_embd,), jnp.float32, -bound2, bound2)
    return w1, b1, w2, b2


def mlp_reference(x, w1, b1, w2, b2):
    h = x @ w1 + b1
    h = 0.5 * h * (1.0 + jax.lax.erf(h * _INV_SQRT2))
    return h @ w2 + b2


if __name__ == "__main__":
    key = jax.random.PRNGKey(0)
    kx, kp, kx2, kp2 = jax.random.split(key, 4)

    # --- config 1: batch=2, seq=8, n_embd=32 (hidden=128) ------------------
    B, T, C = 2, 8, 32
    x = jax.random.normal(kx, (B, T, C), jnp.float32)
    w1, b1, w2, b2 = init_params(kp, C)
    y_ref = mlp_reference(x, w1, b1, w2, b2)

    # 1) default (resident-weight) path, f32: tight tolerance vs reference.
    y = jax.block_until_ready(mlp_forward(x, w1, b1, w2, b2))
    assert y.shape == (B, T, C)
    assert jnp.allclose(y, y_ref, atol=1e-5, rtol=1e-5)

    # 2) bf16 mixed-precision path: bf16 MXU inputs, f32 accumulation / GELU.
    bf16 = jnp.bfloat16
    y_bf = jax.block_until_ready(
        mlp_forward(x.astype(bf16), w1.astype(bf16), b1.astype(bf16),
                    w2.astype(bf16), b2.astype(bf16)))
    assert y_bf.dtype == bf16
    max_err = float(jnp.max(jnp.abs(y_bf.astype(jnp.float32) - y_ref)))
    assert max_err < 5e-2, max_err

    # --- config 2: n_embd=64 (hidden=256) exercises the other code paths ----
    C2 = 64
    x2 = jax.random.normal(kx2, (B, T, C2), jnp.float32)
    p2 = init_params(kp2, C2)
    y2_ref = mlp_reference(x2, *p2)

    # 3) streaming-weight path (2-D grid, f32 accumulator scratch, 2 k-steps).
    y2s = jax.block_until_ready(
        mlp_forward(x2, *p2, _force_mode="stream", _force_tm=8, _force_tn=128))
    assert jnp.allclose(y2s, y2_ref, atol=1e-5, rtol=1e-5)

    # 4) resident path with in-kernel hidden chunking (fori_loop over slices).
    y2c = jax.block_until_ready(
        mlp_forward(x2, *p2, _force_mode="resident", _force_tm=8,
                    _force_hc=128))
    assert jnp.allclose(y2c, y2_ref, atol=1e-5, rtol=1e-5)

    print("KERNEL_OK")
</pallas_src>

<mosaic_0001>
module attributes {stable_mosaic.version = 11 : i64} {
  func.func @_mlp_kernel_resident(%arg0: i32, %arg1: memref<8x32xf32, #tpu.memory_space<vmem>>, %arg2: memref<32x128xf32, #tpu.memory_space<vmem>>, %arg3: memref<1x128xf32, #tpu.memory_space<vmem>>, %arg4: memref<128x32xf32, #tpu.memory_space<vmem>>, %arg5: memref<1x32xf32, #tpu.memory_space<vmem>>, %arg6: memref<8x32xf32, #tpu.memory_space<vmem>>) attributes {dimension_semantics = [#tpu.dimension_semantics<parallel>], iteration_bounds = array<i64: 2>, scalar_prefetch = 0 : i64, scratch_operands = 0 : i64, tpu.core_type = #tpu.core_type<tc>, window_params = [{transform_indices = @transform_0, window_bounds = array<i64: 8, 32>}, {pipeline_mode = #tpu.pipeline_mode<synchronous>, transform_indices = @transform_1, window_bounds = array<i64: 32, 128>}, {pipeline_mode = #tpu.pipeline_mode<synchronous>, transform_indices = @transform_2, window_bounds = array<i64: 1, 128>}, {pipeline_mode = #tpu.pipeline_mode<synchronous>, transform_indices = @transform_3, window_bounds = array<i64: 128, 32>}, {pipeline_mode = #tpu.pipeline_mode<synchronous>, transform_indices = @transform_4, window_bounds = array<i64: 1, 32>}, {transform_indices = @transform_5, window_bounds = array<i64: 8, 32>}]} {
    %c0 = arith.constant 0 : index
    %c0_0 = arith.constant 0 : index
    %0 = vector.load %arg1[%c0, %c0_0] : memref<8x32xf32, #tpu.memory_space<vmem>>, vector<8x32xf32>
    %c0_1 = arith.constant 0 : index
    %c0_2 = arith.constant 0 : index
    %1 = vector.load %arg2[%c0_1, %c0_2] : memref<32x128xf32, #tpu.memory_space<vmem>>, vector<32x128xf32>
    %cst = arith.constant dense<0.000000e+00> : vector<8x128xf32>
    %2 = tpu.matmul %0, %1, %cst {dimension_numbers = #tpu.dot_dimension_numbers<[1], [0], [0], [1], [0, 0, 1, 1], [], []>} : vector<8x32xf32>, vector<32x128xf32>, vector<8x128xf32> -> vector<8x128xf32>
    %c0_3 = arith.constant 0 : index
    %c0_4 = arith.constant 0 : index
    %3 = vector.load %arg3[%c0_3, %c0_4] : memref<1x128xf32, #tpu.memory_space<vmem>>, vector<1x128xf32>
    %4 = vector.broadcast %3 : vector<1x128xf32> to vector<8x128xf32>
    %5 = arith.addf %2, %4 : vector<8x128xf32>
    %cst_5 = arith.constant 5.000000e-01 : f32
    %6 = vector.broadcast %cst_5 : f32 to vector<8x128xf32>
    %7 = arith.mulf %6, %5 : vector<8x128xf32>
    %cst_6 = arith.constant 0.707106769 : f32
    %8 = vector.broadcast %cst_6 : f32 to vector<8x128xf32>
    %9 = arith.mulf %5, %8 : vector<8x128xf32>
    %10 = math.erf %9 : vector<8x128xf32>
    %cst_7 = arith.constant 1.000000e+00 : f32
    %11 = vector.broadcast %cst_7 : f32 to vector<8x128xf32>
    %12 = arith.addf %11, %10 : vector<8x128xf32>
    %13 = arith.mulf %7, %12 : vector<8x128xf32>
    %c0_8 = arith.constant 0 : index
    %c0_9 = arith.constant 0 : index
    %14 = vector.load %arg4[%c0_8, %c0_9] : memref<128x32xf32, #tpu.memory_space<vmem>>, vector<128x32xf32>
    %cst_10 = arith.constant dense<0.000000e+00> : vector<8x32xf32>
    %15 = tpu.matmul %13, %14, %cst_10 {dimension_numbers = #tpu.dot_dimension_numbers<[1], [0], [0], [1], [0, 0, 1, 1], [], []>} : vector<8x128xf32>, vector<128x32xf32>, vector<8x32xf32> -> vector<8x32xf32>
    %c0_11 = arith.constant 0 : index
    %c0_12 = arith.constant 0 : index
    %16 = vector.load %arg5[%c0_11, %c0_12] : memref<1x32xf32, #tpu.memory_space<vmem>>, vector<1x32xf32>
    %17 = vector.broadcast %16 : vector<1x32xf32> to vector<8x32xf32>
    %18 = arith.addf %15, %17 : vector<8x32xf32>
    %c0_13 = arith.constant 0 : index
    %c0_14 = arith.constant 0 : index
    %19 = vector.load %arg6[%c0_13, %c0_14] : memref<8x32xf32, #tpu.memory_space<vmem>>, vector<8x32xf32>
    tpu.vector_store %arg6[%c0_13, %c0_14], %18 {strides = array<i32>} : memref<8x32xf32, #tpu.memory_space<vmem>>, vector<8x32xf32>,
    return
  }
  func.func @transform_0(%arg0: i32) -> (i32, i32) {
    %c0_i32 = arith.constant 0 : i32
    %c0_i32_0 = arith.constant 0 : i32
    return %arg0, %c0_i32 : i32, i32
  }
  func.func @transform_1(%arg0: i32) -> (i32, i32) {
    %c0_i32 = arith.constant 0 : i32
    %c0_i32_0 = arith.constant 0 : i32
    %c0_i32_1 = arith.constant 0 : i32
    return %c0_i32, %c0_i32_0 : i32, i32
  }
  func.func @transform_2(%arg0: i32) -> (i32, i32) {
    %c0_i32 = arith.constant 0 : i32
    %c0_i32_0 = arith.constant 0 : i32
    %c0_i32_1 = arith.constant 0 : i32
    return %c0_i32, %c0_i32_0 : i32, i32
  }
  func.func @transform_3(%arg0: i32) -> (i32, i32) {
    %c0_i32 = arith.constant 0 : i32
    %c0_i32_0 = arith.constant 0 : i32
    %c0_i32_1 = arith.constant 0 : i32
    return %c0_i32, %c0_i32_0 : i32, i32
  }
  func.func @transform_4(%arg0: i32) -> (i32, i32) {
    %c0_i32 = arith.constant 0 : i32
    %c0_i32_0 = arith.constant 0 : i32
    %c0_i32_1 = arith.constant 0 : i32
    return %c0_i32, %c0_i32_0 : i32, i32
  }
  func.func @transform_5(%arg0: i32) -> (i32, i32) {
    %c0_i32 = arith.constant 0 : i32
    %c0_i32_0 = arith.constant 0 : i32
    return %arg0, %c0_i32 : i32, i32
  }
}

module attributes {stable_mosaic.version = 11 : i64} {
  func.func @_mlp_kernel_resident(%arg0: i32, %arg1: memref<8x32xf32, #tpu.memory_space<vmem>>, %arg2: memref<32x128xf32, #tpu.memory_space<vmem>>, %arg3: memref<1x128xf32, #tpu.memory_space<vmem>>, %arg4: memref<128x32xf32, #tpu.memory_space<vmem>>, %arg5: memref<1x32xf32, #tpu.memory_space<vmem>>, %arg6: memref<8x32xf32, #tpu.memory_space<vmem>>) attributes {dimension_semantics = [#tpu.dimension_semantics<parallel>], iteration_bounds = array<i64: 2>, scalar_prefetch = 0 : i64, scratch_operands = 0 : i64, tpu.core_type = #tpu.core_type<tc>, window_params = [{transform_indices = @transform_0, window_bounds = array<i64: 8, 32>}, {pipeline_mode = #tpu.pipeline_mode<synchronous>, transform_indices = @transform_1, window_bounds = array<i64: 32, 128>}, {pipeline_mode = #tpu.pipeline_mode<synchronous>, transform_indices = @transform_2, window_bounds = array<i64: 1, 128>}, {pipeline_mode = #tpu.pipeline_mode<synchronous>, transform_indices = @transform_3, window_bounds = array<i64: 128, 32>}, {pipeline_mode = #tpu.pipeline_mode<synchronous>, transform_indices = @transform_4, window_bounds = array<i64: 1, 32>}, {transform_indices = @transform_5, window_bounds = array<i64: 8, 32>}]} {
    %c0 = arith.constant 0 : index
    %c0_0 = arith.constant 0 : index
    %0 = vector.load %arg1[%c0, %c0_0] : memref<8x32xf32, #tpu.memory_space<vmem>>, vector<8x32xf32>
    %c0_1 = arith.constant 0 : index
    %c0_2 = arith.constant 0 : index
    %1 = vector.load %arg2[%c0_1, %c0_2] : memref<32x128xf32, #tpu.memory_space<vmem>>, vector<32x128xf32>
    %cst = arith.constant dense<0.000000e+00> : vector<8x128xf32>
    %2 = tpu.matmul %0, %1, %cst {dimension_numbers = #tpu.dot_dimension_numbers<[1], [0], [0], [1], [0, 0, 1, 1], [], []>} : vector<8x32xf32>, vector<32x128xf32>, vector<8x128xf32> -> vector<8x128xf32>
    %c0_3 = arith.constant 0 : index
    %c0_4 = arith.constant 0 : index
    %3 = vector.load %arg3[%c0_3, %c0_4] : memref<1x128xf32, #tpu.memory_space<vmem>>, vector<1x128xf32>
    %4 = vector.broadcast %3 : vector<1x128xf32> to vector<8x128xf32>
    %5 = arith.addf %2, %4 : vector<8x128xf32>
    %cst_5 = arith.constant 5.000000e-01 : f32
    %6 = vector.broadcast %cst_5 : f32 to vector<8x128xf32>
    %7 = arith.mulf %6, %5 : vector<8x128xf32>
    %cst_6 = arith.constant 0.707106769 : f32
    %8 = vector.broadcast %cst_6 : f32 to vector<8x128xf32>
    %9 = arith.mulf %5, %8 : vector<8x128xf32>
    %10 = math.erf %9 : vector<8x128xf32>
    %cst_7 = arith.constant 1.000000e+00 : f32
    %11 = vector.broadcast %cst_7 : f32 to vector<8x128xf32>
    %12 = arith.addf %11, %10 : vector<8x128xf32>
    %13 = arith.mulf %7, %12 : vector<8x128xf32>
    %c0_8 = arith.constant 0 : index
    %c0_9 = arith.constant 0 : index
    %14 = vector.load %arg4[%c0_8, %c0_9] : memref<128x32xf32, #tpu.memory_space<vmem>>, vector<128x32xf32>
    %cst_10 = arith.constant dense<0.000000e+00> : vector<8x32xf32>
    %15 = tpu.matmul %13, %14, %cst_10 {dimension_numbers = #tpu.dot_dimension_numbers<[1], [0], [0], [1], [0, 0, 1, 1], [], []>} : vector<8x128xf32>, vector<128x32xf32>, vector<8x32xf32> -> vector<8x32xf32>
    %c0_11 = arith.constant 0 : index
    %c0_12 = arith.constant 0 : index
    %16 = vector.load %arg5[%c0_11, %c0_12] : memref<1x32xf32, #tpu.memory_space<vmem>>, vector<1x32xf32>
    %17 = vector.broadcast %16 : vector<1x32xf32> to vector<8x32xf32>
    %18 = arith.addf %15, %17 : vector<8x32xf32>
    %c0_13 = arith.constant 0 : index
    %c0_14 = arith.constant 0 : index
    %19 = vector.load %arg6[%c0_13, %c0_14] : memref<8x32xf32, #tpu.memory_space<vmem>>, vector<8x32xf32>
    tpu.vector_store %arg6[%c0_13, %c0_14], %18 {strides = array<i32>} : memref<8x32xf32, #tpu.memory_space<vmem>>, vector<8x32xf32>,
    return
  }
  func.func @transform_0(%arg0: i32) -> (i32, i32) {
    %c0_i32 = arith.constant 0 : i32
    %c0_i32_0 = arith.constant 0 : i32
    return %arg0, %c0_i32 : i32, i32
  }
  func.func @transform_1(%arg0: i32) -> (i32, i32) {
    %c0_i32 = arith.constant 0 : i32
    %c0_i32_0 = arith.constant 0 : i32
    %c0_i32_1 = arith.constant 0 : i32
    return %c0_i32, %c0_i32_0 : i32, i32
  }
  func.func @transform_2(%arg0: i32) -> (i32, i32) {
    %c0_i32 = arith.constant 0 : i32
    %c0_i32_0 = arith.constant 0 : i32
    %c0_i32_1 = arith.constant 0 : i32
    return %c0_i32, %c0_i32_0 : i32, i32
  }
  func.func @transform_3(%arg0: i32) -> (i32, i32) {
    %c0_i32 = arith.constant 0 : i32
    %c0_i32_0 = arith.constant 0 : i32
    %c0_i32_1 = arith.constant 0 : i32
    return %c0_i32, %c0_i32_0 : i32, i32
  }
  func.func @transform_4(%arg0: i32) -> (i32, i32) {
    %c0_i32 = arith.constant 0 : i32
    %c0_i32_0 = arith.constant 0 : i32
    %c0_i32_1 = arith.constant 0 : i32
    return %c0_i32, %c0_i32_0 : i32, i32
  }
  func.func @transform_5(%arg0: i32) -> (i32, i32) {
    %c0_i32 = arith.constant 0 : i32
    %c0_i32_0 = arith.constant 0 : i32
    return %arg0, %c0_i32 : i32, i32
  }
}

</mosaic_0001>

<llo_original>
// kernel: tpu_custom_call.1
$region0: #{tpu_custom_call.1}
  #allocation0 [shape = 'u32[]', space=smem, size = 0x4, offset = 0x4, fixed_abs, tag = 'smem constant byte address 0x4 - core index']
  #allocation1 [shape = 'u32[144,128]{1,0:T(1,128)}', space=vmem, size = 0x12000, scoped, tag = 'internal scratch']
  %s0 = inlined_call_operand.vmem [shape: f32[16,32], index: 0, kind: input, shape index: {}]
  %s1 = inlined_call_operand.vmem [shape: f32[32,128], index: 1, kind: input, shape index: {}]
  %s2 = inlined_call_operand.vmem [shape: f32[1,128], index: 2, kind: input, shape index: {}]
  %s3 = inlined_call_operand.vmem [shape: f32[128,32], index: 3, kind: input, shape index: {}]
  %s4 = inlined_call_operand.vmem [shape: f32[1,32], index: 4, kind: input, shape index: {}]
  %s5 = inlined_call_operand.hbm [shape: f32[16,32], index: 5, kind: output, shape index: {}]
  %s6 = sld [smem:[#allocation0]]
  $region53: #{tpu_custom_call.1} parent=0
    _
  %s8 = ssub.s32 1, %s6
  %s9 = scalar_select 0, %s8, %s6
  $region1: #{tpu_custom_call.1} parent=0
    #allocation2 [shape = 'u8[8192]{0}', space=vmem, size = 0x2000, scoped, tag = 'output window, operand 0']
    #allocation3 [shape = 's32[2]{0}', space=sflag, size = 0x8, scoped, tag = 'scoped memory for tpu_custom_call.1']
    %10 = vsyncpa [#allocation3], 0
    %s11 = scalar_lea.sflag [#allocation3], 1
    %12 = vsyncpa %s11, 0
    loop: start=0, step=1, limit=4
    $region2: #{tpu_custom_call.1} parent=1 // loop_pre_header
      _
    $region3: #{tpu_custom_call.1} parent=1 // loop_header
      %s14 = sphi 0, %s18
      %p15 = scmp.ge.s32.totalorder %s14, 4
      %s24 = sphi 0, %s26
      %s27 = sphi 0, %s24
      %s28 = sphi 0, %s27
      %s44 = sphi 0, %s28
      %s48 = sphi 0, %s48
      %s50 = sphi 0, %s48
      %s51 = sphi 0, %s50
      %s65 = sphi 0, %s51
      %s69 = sphi 0, %s69
      %s71 = sphi 0, %s69
      %s72 = sphi 0, %s71
      %s86 = sphi 0, %s72
      %s90 = sphi 0, %s90
      %s92 = sphi 0, %s90
      %s93 = sphi 0, %s92
      %s107 = sphi 0, %s93
      %s111 = sphi 0, %s111
      %s113 = sphi 0, %s111
      %s114 = sphi 0, %s113
      %s128 = sphi 0, %s114
      %s134 = sphi 0, %s136
      %s137 = sphi 0, %s134
      %s138 = sphi 0, %s137
      %s154 = sphi 0, %s138
    $region4: #{tpu_custom_call.1} parent=1 // loop_header_branch
      %17 = sbr.rel (%p15) target = $region8
    $region5: #{tpu_custom_call.1} parent=1 // loop_body
      %s19 = ssub.s32 %s14, 1
      %s20 = ssub.s32 %s14, 2
      %s21 = sadd.s32 %s14, 1
      %s22 = ssub.s32 %s14, %s21
      %p23 = scmp.eq.s32.totalorder %s22, 0
      %s25 = sadd.s32 %s24, 1
      %s26 = scalar_select %p23, %s24, %s25
      %p29 = pneg %p23
      %p30 = scmp.eq.s32.totalorder %s14, 1
      %p31 = por %p29, %p30
      %p32 = scmp.ne.s32.totalorder %s24, %s27
      %p33 = scmp.eq.s32.totalorder %s14, 0
      %p34 = por %p32, %p33
      %p35 = scmp.ne.s32.totalorder %s24, %s27
      %p36 = scmp.eq.s32.totalorder %s19, 1
      %p37 = por %p35, %p36
      %p38 = scmp.ne.s32.totalorder %s27, %s28
      %p39 = scmp.eq.s32.totalorder %s19, 0
      %p40 = por %p38, %p39
      %p41 = scmp.ne.s32.totalorder %s27, %s28
      %p42 = scmp.eq.s32.totalorder %s20, 1
      %p43 = por %p41, %p42
      %p45 = scmp.ne.s32.totalorder %s28, %s44
      %p46 = scmp.eq.s32.totalorder %s20, 0
      %p47 = por %p45, %p46
      %s49 = sadd.s32 %s48, 1
      %p52 = scmp.eq.s32.totalorder %s14, 1
      %p53 = scmp.ne.s32.totalorder %s48, %s50
      %p54 = scmp.eq.s32.totalorder %s14, 0
      %p55 = por %p53, %p54
      %p56 = scmp.ne.s32.totalorder %s48, %s50
      %p57 = scmp.eq.s32.totalorder %s19, 1
      %p58 = por %p56, %p57
      %p59 = scmp.ne.s32.totalorder %s50, %s51
      %p60 = scmp.eq.s32.totalorder %s19, 0
      %p61 = por %p59, %p60
      %p62 = scmp.ne.s32.totalorder %s50, %s51
      %p63 = scmp.eq.s32.totalorder %s20, 1
      %p64 = por %p62, %p63
      %p66 = scmp.ne.s32.totalorder %s51, %s65
      %p67 = scmp.eq.s32.totalorder %s20, 0
      %p68 = por %p66, %p67
      %s70 = sadd.s32 %s69, 1
      %p73 = scmp.eq.s32.totalorder %s14, 1
      %p74 = scmp.ne.s32.totalorder %s69, %s71
      %p75 = scmp.eq.s32.totalorder %s14, 0
      %p76 = por %p74, %p75
      %p77 = scmp.ne.s32.totalorder %s69, %s71
      %p78 = scmp.eq.s32.totalorder %s19, 1
      %p79 = por %p77, %p78
      %p80 = scmp.ne.s32.totalorder %s71, %s72
      %p81 = scmp.eq.s32.totalorder %s19, 0
      %p82 = por %p80, %p81
      %p83 = scmp.ne.s32.totalorder %s71, %s72
      %p84 = scmp.eq.s32.totalorder %s20, 1
      %p85 = por %p83, %p84
      %p87 = scmp.ne.s32.totalorder %s72, %s86
      %p88 = scmp.eq.s32.totalorder %s20, 0
      %p89 = por %p87, %p88
      %s91 = sadd.s32 %s90, 1
      %p94 = scmp.eq.s32.totalorder %s14, 1
      %p95 = scmp.ne.s32.totalorder %s90, %s92
      %p96 = scmp.eq.s32.totalorder %s14, 0
      %p97 = por %p95, %p96
      %p98 = scmp.ne.s32.totalorder %s90, %s92
      %p99 = scmp.eq.s32.totalorder %s19, 1
      %p100 = por %p98, %p99
      %p101 = scmp.ne.s32.totalorder %s92, %s93
      %p102 = scmp.eq.s32.totalorder %s19, 0
      %p103 = por %p101, %p102
      %p104 = scmp.ne.s32.totalorder %s92, %s93
      %p105 = scmp.eq.s32.totalorder %s20, 1
      %p106 = por %p104, %p105
      %p108 = scmp.ne.s32.totalorder %s93, %s107
      %p109 = scmp.eq.s32.totalorder %s20, 0
      %p110 = por %p108, %p109
      %s112 = sadd.s32 %s111, 1
      %p115 = scmp.eq.s32.totalorder %s14, 1
      %p116 = scmp.ne.s32.totalorder %s111, %s113
      %p117 = scmp.eq.s32.totalorder %s14, 0
      %p118 = por %p116, %p117
      %p119 = scmp.ne.s32.totalorder %s111, %s113
      %p120 = scmp.eq.s32.totalorder %s19, 1
      %p121 = por %p119, %p120
      %p122 = scmp.ne.s32.totalorder %s113, %s114
      %p123 = scmp.eq.s32.totalorder %s19, 0
      %p124 = por %p122, %p123
      %p125 = scmp.ne.s32.totalorder %s113, %s114
      %p126 = scmp.eq.s32.totalorder %s20, 1
      %p127 = por %p125, %p126
      %p129 = scmp.ne.s32.totalorder %s114, %s128
      %p130 = scmp.eq.s32.totalorder %s20, 0
      %p131 = por %p129, %p130
      %s132 = ssub.s32 %s14, %s21
      %p133 = scmp.eq.s32.totalorder %s132, 0
      %s135 = sadd.s32 %s134, 1
      %s136 = scalar_select %p133, %s134, %s135
      %p139 = pneg %p133
      %p140 = scmp.eq.s32.totalorder %s14, 1
      %p141 = por %p139, %p140
      %p142 = scmp.ne.s32.totalorder %s134, %s137
      %p143 = scmp.eq.s32.totalorder %s14, 0
      %p144 = por %p142, %p143
      %p145 = scmp.ne.s32.totalorder %s134, %s137
      %p146 = scmp.eq.s32.totalorder %s19, 1
      %p147 = por %p145, %p146
      %p148 = scmp.ne.s32.totalorder %s137, %s138
      %p149 = scmp.eq.s32.totalorder %s19, 0
      %p150 = por %p148, %p149
      %p151 = scmp.ne.s32.totalorder %s137, %s138
      %p152 = scmp.eq.s32.totalorder %s20, 1
      %p153 = por %p151, %p152
      %p155 = scmp.ne.s32.totalorder %s138, %s154
      %p156 = scmp.eq.s32.totalorder %s20, 0
      %p157 = por %p155, %p156
      %p158 = scmp.le.s32.totalorder 1, %s14
      %p159 = scmp.lt.s32.totalorder %s14, 3
      %p160 = pnand %p158, %p159
      %p161 = pneg %p160
      // Predicated region
      $region9: #{tpu_custom_call.1} parent=5 // pred_check
        _
      $region10: #{tpu_custom_call.1} parent=5 // pred_check_branch
        %163 = sbr.rel (%p160) target = $region12
      $region11: #{tpu_custom_call.1} parent=5 // pred_region
        %s164 = ssub.s32 %s14, 1
        // Predicated region
        $region13: #{tpu_custom_call.1} parent=11 // pred_check
          %p165 = pneg %p61
        $region14: #{tpu_custom_call.1} parent=11 // pred_check_branch
          %167 = sbr.rel (%p165) target = $region16
        $region15: #{tpu_custom_call.1} parent=11 // pred_region
          _
        $region16: #{tpu_custom_call.1} parent=11 // pred_fallthru
          _
        // Predicated region
        $region17: #{tpu_custom_call.1} parent=11 // pred_check
          %p168 = pneg %p82
        $region18: #{tpu_custom_call.1} parent=11 // pred_check_branch
          %170 = sbr.rel (%p168) target = $region20
        $region19: #{tpu_custom_call.1} parent=11 // pred_region
          _
        $region20: #{tpu_custom_call.1} parent=11 // pred_fallthru
          _
        // Predicated region
        $region21: #{tpu_custom_call.1} parent=11 // pred_check
          %p171 = pneg %p103
        $region22: #{tpu_custom_call.1} parent=11 // pred_check_branch
          %173 = sbr.rel (%p171) target = $region24
        $region23: #{tpu_custom_call.1} parent=11 // pred_region
          _
        $region24: #{tpu_custom_call.1} parent=11 // pred_fallthru
          _
        // Predicated region
        $region25: #{tpu_custom_call.1} parent=11 // pred_check
          %p174 = pneg %p124
        $region26: #{tpu_custom_call.1} parent=11 // pred_check_branch
          %176 = sbr.rel (%p174) target = $region28
        $region27: #{tpu_custom_call.1} parent=11 // pred_region
          _
        $region28: #{tpu_custom_call.1} parent=11 // pred_fallthru
          _
      $region12: #{tpu_custom_call.1} parent=5 // pred_fallthru
        _
      %p177 = scmp.lt.s32.totalorder %s14, 2
      // Predicated region
      $region29: #{tpu_custom_call.1} parent=5 // pred_check
        %p178 = pneg %p177
      $region30: #{tpu_custom_call.1} parent=5 // pred_check_branch
        %180 = sbr.rel (%p178) target = $region32
      $region31: #{tpu_custom_call.1} parent=5 // pred_region
        // Predicated region
        $region33: #{tpu_custom_call.1} parent=31 // pred_check
          %p181 = pneg %p34
        $region34: #{tpu_custom_call.1} parent=31 // pred_check_branch
          %183 = sbr.rel (%p181) target = $region36
        $region35: #{tpu_custom_call.1} parent=31 // pred_region
          %p184 = scmp.lt.s32.totalorder %s14, 1
          %s185 = scalar_select %p184, %s14, 1
          %s186 = smul.addr %s185, 8
          %s187 = scalar_lea.vmem %s0, %s186
        $region36: #{tpu_custom_call.1} parent=31 // pred_fallthru
          _
      $region32: #{tpu_custom_call.1} parent=5 // pred_fallthru
        _
      %p188 = scmp.le.s32.totalorder 1, %s14
      %p189 = scmp.lt.s32.totalorder %s14, 3
      %p190 = pnand %p188, %p189
      %p191 = pneg %p190
      // Predicated region
      $region37: #{tpu_custom_call.1} parent=5 // pred_check
        _
      $region38: #{tpu_custom_call.1} parent=5 // pred_check_branch
        %193 = sbr.rel (%p190) target = $region40
      $region39: #{tpu_custom_call.1} parent=5 // pred_region
        %s194 = ssub.s32 %s14, 1
        %p195 = scmp.lt.s32.totalorder %s19, 1
        %s196 = scalar_select %p195, %s19, 1
        %s197 = smul.addr %s196, 8
        %s198 = scalar_lea.vmem %s0, %s197
        %p199 = pneg %p40
        %p200 = pneg %p37
        %p201 = pneg %p61
        %p202 = pneg %p58
        %p203 = pneg %p82
        %p204 = pneg %p79
        %p205 = pneg %p103
        %p206 = pneg %p100
        %p207 = pneg %p124
        %p208 = pneg %p121
        %p209 = pneg %p150
        %p210 = pneg %p147
        %s211 = sand.u32 %s137, 1
        %s212 = scalar_lea.sflag [#allocation3], %s211
        %s213 = sand.u32 %s137, 1
        %s214 = smul.addr %s213, 8
        %s215 = scalar_lea.vmem [#allocation2], %s214
        %p216 = scmp.lt.s32.totalorder %s19, 1
        %s217 = scalar_select %p216, %s19, 1
        %s218 = smul.addr %s217, 8
        %s219 = scalar_lea.vmem %s0, %s218
        %v220 = vld [vmem:[%s219] sm:$0xff]
        %v221 = vld [vmem:[%s1] sm:$0xff]
        %v222 = vld [vmem:[%s1 + $0x8] sm:$0xff]
        %v223 = vld [vmem:[%s1 + $0x10] sm:$0xff]
        %v224 = vld [vmem:[%s1 + $0x18] sm:$0xff]
        %v225 = vld [vmem:[%s2] sm:$0x1]
        %v227 = vlaneseq
        %v228 = vshrl.u32 %v227, 7
        %v229 = vsub.s32 0, %v228
        %v230 = vrot.slane %v225, %v229
        %vm232 = vcmask 261120
        %v234 = vsel %vm232, %v220, 0
        %236 = vmatprep.subr.mxu0 0.0
        %237 = vmatpush1.msra.mxu0 0.0
        %238 = vmatprep.subr.mxu0 0.0
        %239 = vmatpush1.msra.mxu0 0.0
        %240 = vmatprep.subr.mxu0 0.0
        %241 = vmatpush1.msra.mxu0 0.0
        %242 = vmatprep.subr.mxu0 0.0
        %243 = vmatpush1.msra.mxu0 0.0
        %244 = vmatprep.subr.mxu0 0.0
        %245 = vmatpush1.msra.mxu0 0.0
        %246 = vmatprep.subr.mxu0 0.0
        %247 = vmatpush1.msra.mxu0 0.0
        %248 = vmatprep.subr.mxu0 0.0
        %249 = vmatpush1.msra.mxu0 0.0
        %250 = vmatprep.subr.mxu0 0.0
        %251 = vmatpush1.msra.mxu0 0.0
        %252 = vmatprep.subr.mxu0 0.0
        %253 = vmatpush1.msra.mxu0 0.0
        %254 = vmatprep.subr.mxu0 0.0
        %255 = vmatpush1.msra.mxu0 0.0
        %256 = vmatprep.subr.mxu0 0.0
        %257 = vmatpush1.msra.mxu0 0.0
        %258 = vmatprep.subr.mxu0 0.0
        %259 = vmatpush1.msra.mxu0 0.0
        %260 = vmatprep.subr.mxu0 0.0
        %261 = vmatpush1.msra.mxu0 %v224
        %262 = vmatprep.subr.mxu0 0.0
        %263 = vmatpush1.msra.mxu0 %v223
        %264 = vmatprep.subr.mxu0 0.0
        %265 = vmatpush1.msra.mxu0 %v222
        %266 = vmatprep.subr.mxu0 0.0
        %267 = vmatpush1.msra.mxu0 %v221
        %268 = vmatprep.subr.mxu0 0.0
        %269 = vmatpush2.msra.mxu0 0.0
        %270 = vmatprep.subr.mxu0 0.0
        %271 = vmatpush2.msra.mxu0 0.0
        %272 = vmatprep.subr.mxu0 0.0
        %273 = vmatpush2.msra.mxu0 0.0
        %274 = vmatprep.subr.mxu0 0.0
        %275 = vmatpush2.msra.mxu0 0.0
        %276 = vmatprep.subr.mxu0 0.0
        %277 = vmatpush2.msra.mxu0 0.0
        %278 = vmatprep.subr.mxu0 0.0
        %279 = vmatpush2.msra.mxu0 0.0
        %280 = vmatprep.subr.mxu0 0.0
        %281 = vmatpush2.msra.mxu0 0.0
        %282 = vmatprep.subr.mxu0 0.0
        %283 = vmatpush2.msra.mxu0 0.0
        %284 = vmatprep.subr.mxu0 0.0
        %285 = vmatpush2.msra.mxu0 0.0
        %286 = vmatprep.subr.mxu0 0.0
        %287 = vmatpush2.msra.mxu0 0.0
        %288 = vmatprep.subr.mxu0 0.0
        %289 = vmatpush2.msra.mxu0 0.0
        %290 = vmatprep.subr.mxu0 0.0
        %291 = vmatpush2.msra.mxu0 0.0
        %292 = vmatprep.subr.mxu0 0.0
        %293 = vmatpush2.msra.mxu0 0.0
        %294 = vmatprep.subr.mxu0 0.0
        %295 = vmatpush2.msra.mxu0 0.0
        %296 = vmatprep.subr.mxu0 0.0
        %297 = vmatpush2.msra.mxu0 0.0
        %298 = vmatprep.subr.mxu0 0.0
        %299 = vmatpush2.msra.mxu0 0.0
        %300 = vmatprep.mubr.f32.mxu0 0.0
        %301 = vmatmul.mubr.f32.gmra.mxu0 %v234
        %v302 = vpop.f32.mrf.mxu0
        %v303 = vadd.f32 %v230, %v302
        %v304 = vpop.f32.mrf.mxu0
        %305 = vdwg.mxu0
        %v306 = vmul.f32 %v303, 0.5
        %v307 = vmul.f32 %v303, 0.70710677
        %v308 = verf.f32.pop %v307
        %v309 = vadd.f32 %v308, 1.0
        %v310 = vmul.f32 %v306, %v309
        %v311 = vld [vmem:[%s3] sm:$0xff]
        %v312 = vld [vmem:[%s3 + $0x8] sm:$0xff]
        %v313 = vld [vmem:[%s3 + $0x10] sm:$0xff]
        %v314 = vld [vmem:[%s3 + $0x18] sm:$0xff]
        %v315 = vld [vmem:[%s3 + $0x20] sm:$0xff]
        %v316 = vld [vmem:[%s3 + $0x28] sm:$0xff]
        %v317 = vld [vmem:[%s3 + $0x30] sm:$0xff]
        %v318 = vld [vmem:[%s3 + $0x38] sm:$0xff]
        %v319 = vld [vmem:[%s3 + $0x40] sm:$0xff]
        %v320 = vld [vmem:[%s3 + $0x48] sm:$0xff]
        %v321 = vld [vmem:[%s3 + $0x50] sm:$0xff]
        %v322 = vld [vmem:[%s3 + $0x58] sm:$0xff]
        %v323 = vld [vmem:[%s3 + $0x60] sm:$0xff]
        %v324 = vld [vmem:[%s3 + $0x68] sm:$0xff]
        %v325 = vld [vmem:[%s3 + $0x70] sm:$0xff]
        %v326 = vld [vmem:[%s3 + $0x78] sm:$0xff]
        %v327 = vld [vmem:[%s4] sm:$0x1]
        %v329 = vlaneseq
        %v330 = vshrl.u32 %v329, 7
        %v331 = vsub.s32 0, %v330
        %v332 = vrot.slane %v327, %v331
        %334 = vmatprep.subr.mxu0 0.0
        %335 = vmatpush1.msra.mxu0 %v326
        %336 = vmatprep.subr.mxu0 0.0
        %337 = vmatpush1.msra.mxu0 %v325
        %338 = vmatprep.subr.mxu0 0.0
        %339 = vmatpush1.msra.mxu0 %v324
        %340 = vmatprep.subr.mxu0 0.0
        %341 = vmatpush1.msra.mxu0 %v323
        %342 = vmatprep.subr.mxu0 0.0
        %343 = vmatpush1.msra.mxu0 %v322
        %344 = vmatprep.subr.mxu0 0.0
        %345 = vmatpush1.msra.mxu0 %v321
        %346 = vmatprep.subr.mxu0 0.0
        %347 = vmatpush1.msra.mxu0 %v320
        %348 = vmatprep.subr.mxu0 0.0
        %349 = vmatpush1.msra.mxu0 %v319
        %350 = vmatprep.subr.mxu0 0.0
        %351 = vmatpush1.msra.mxu0 %v318
        %352 = vmatprep.subr.mxu0 0.0
        %353 = vmatpush1.msra.mxu0 %v317
        %354 = vmatprep.subr.mxu0 0.0
        %355 = vmatpush1.msra.mxu0 %v316
        %356 = vmatprep.subr.mxu0 0.0
        %357 = vmatpush1.msra.mxu0 %v315
        %358 = vmatprep.subr.mxu0 0.0
        %359 = vmatpush1.msra.mxu0 %v314
        %360 = vmatprep.subr.mxu0 0.0
        %361 = vmatpush1.msra.mxu0 %v313
        %362 = vmatprep.subr.mxu0 0.0
        %363 = vmatpush1.msra.mxu0 %v312
        %364 = vmatprep.subr.mxu0 0.0
        %365 = vmatpush1.msra.mxu0 %v311
        %366 = vmatprep.subr.mxu0 0.0
        %367 = vmatpush2.msra.mxu0 0.0
        %368 = vmatprep.subr.mxu0 0.0
        %369 = vmatpush2.msra.mxu0 0.0
        %370 = vmatprep.subr.mxu0 0.0
        %371 = vmatpush2.msra.mxu0 0.0
        %372 = vmatprep.subr.mxu0 0.0
        %373 = vmatpush2.msra.mxu0 0.0
        %374 = vmatprep.subr.mxu0 0.0
        %375 = vmatpush2.msra.mxu0 0.0
        %376 = vmatprep.subr.mxu0 0.0
        %377 = vmatpush2.msra.mxu0 0.0
        %378 = vmatprep.subr.mxu0 0.0
        %379 = vmatpush2.msra.mxu0 0.0
        %380 = vmatprep.subr.mxu0 0.0
        %381 = vmatpush2.msra.mxu0 0.0
        %382 = vmatprep.subr.mxu0 0.0
        %383 = vmatpush2.msra.mxu0 0.0
        %384 = vmatprep.subr.mxu0 0.0
        %385 = vmatpush2.msra.mxu0 0.0
        %386 = vmatprep.subr.mxu0 0.0
        %387 = vmatpush2.msra.mxu0 0.0
        %388 = vmatprep.subr.mxu0 0.0
        %389 = vmatpush2.msra.mxu0 0.0
        %390 = vmatprep.subr.mxu0 0.0
        %391 = vmatpush2.msra.mxu0 0.0
        %392 = vmatprep.subr.mxu0 0.0
        %393 = vmatpush2.msra.mxu0 0.0
        %394 = vmatprep.subr.mxu0 0.0
        %395 = vmatpush2.msra.mxu0 0.0
        %396 = vmatprep.subr.mxu0 0.0
        %397 = vmatpush2.msra.mxu0 0.0
        %398 = vmatprep.mubr.f32.mxu0 0.0
        %399 = vmatmul.mubr.f32.gmra.mxu0 %v310
        %v400 = vpop.f32.mrf.mxu0
        %v401 = vadd.f32 %v332, %v400
        %v402 = vpop.f32.mrf.mxu0
        %403 = vdwg.mxu0
        %404 = vst.msk [vmem:[%s215] sm:$0xff] %vm232, %v401
        %s405 = sand.u32 %s137, 1
        %s406 = scalar_lea.sflag [#allocation3], %s405
        %s407 = sand.u32 %s137, 1
        %s408 = smul.addr %s407, 8
        %s409 = scalar_lea.vmem [#allocation2], %s408
        // Predicated region
        $region41: #{tpu_custom_call.1} parent=39 // pred_check
          %p410 = pneg %p147
        $region42: #{tpu_custom_call.1} parent=39 // pred_check_branch
          %412 = sbr.rel (%p410) target = $region44
        $region43: #{tpu_custom_call.1} parent=39 // pred_region
          %s414 = ssub.s32 128, 128
          %415 = vsyncadd %s406, %s414
          %s416 = smul.addr %s19, 128
          %s417 = scalar_lea.hbm %s5, %s416
          %s419 = sshll.u32 %s409, 4
          %s420 = int_to_ptr.vmem [resolvable:$true] %s419
          %422 = dma.vmem_to_hbm [thread:$0]  %s420, 128, %s417, %s406
        $region44: #{tpu_custom_call.1} parent=39 // pred_fallthru
          _
      $region40: #{tpu_custom_call.1} parent=5 // pred_fallthru
        _
      %p423 = scmp.le.s32.totalorder 2, %s14
      // Predicated region
      $region45: #{tpu_custom_call.1} parent=5 // pred_check
        %p424 = pneg %p423
      $region46: #{tpu_custom_call.1} parent=5 // pred_check_branch
        %426 = sbr.rel (%p424) target = $region48
      $region47: #{tpu_custom_call.1} parent=5 // pred_region
        %s427 = ssub.s32 %s14, 2
        // Predicated region
        $region49: #{tpu_custom_call.1} parent=47 // pred_check
          %p428 = pneg %p153
        $region50: #{tpu_custom_call.1} parent=47 // pred_check_branch
          %430 = sbr.rel (%p428) target = $region52
        $region51: #{tpu_custom_call.1} parent=47 // pred_region
          %s431 = sand.u32 %s138, 1
          %s432 = scalar_lea.sflag [#allocation3], %s431
          %s433 = sand.u32 %s138, 1
          %s434 = smul.addr %s433, 8
          %s435 = scalar_lea.vmem [#allocation2], %s434
          %436 = dma.done %s432, 128
        $region52: #{tpu_custom_call.1} parent=47 // pred_fallthru
          _
      $region48: #{tpu_custom_call.1} parent=5 // pred_fallthru
        _
    $region6: #{tpu_custom_call.1} parent=1 // loop_footer
      %s18 = sadd.s32 1, %s14
    $region7: #{tpu_custom_call.1} parent=1 // loop_footer_branch
      %13 = sbr.rel target = $region3
    $region8: #{tpu_custom_call.1} parent=1 // loop_exit
      _
    %437 = vsyncpa [#allocation3], 1
    %s438 = scalar_lea.sflag [#allocation3], 1
    %439 = vsyncpa %s438, 1

// kernel: tpu_custom_call.1
$region0: #{tpu_custom_call.1}
  #allocation0 [shape = 'u32[]', space=smem, size = 0x4, offset = 0x4, fixed_abs, tag = 'smem constant byte address 0x4 - core index']
  #allocation1 [shape = 'u32[144,128]{1,0:T(1,128)}', space=vmem, size = 0x12000, scoped, tag = 'internal scratch']
  %s0 = inlined_call_operand.vmem [shape: f32[16,32], index: 0, kind: input, shape index: {}]
  %s1 = inlined_call_operand.vmem [shape: f32[32,128], index: 1, kind: input, shape index: {}]
  %s2 = inlined_call_operand.vmem [shape: f32[1,128], index: 2, kind: input, shape index: {}]
  %s3 = inlined_call_operand.vmem [shape: f32[128,32], index: 3, kind: input, shape index: {}]
  %s4 = inlined_call_operand.vmem [shape: f32[1,32], index: 4, kind: input, shape index: {}]
  %s5 = inlined_call_operand.hbm [shape: f32[16,32], index: 5, kind: output, shape index: {}]
  %s6 = sld [smem:[#allocation0]]
  $region53: #{tpu_custom_call.1} parent=0
    _
  %s8 = ssub.s32 1, %s6
  %s9 = scalar_select 0, %s8, %s6
  $region1: #{tpu_custom_call.1} parent=0
    #allocation2 [shape = 'u8[8192]{0}', space=vmem, size = 0x2000, scoped, tag = 'output window, operand 0']
    #allocation3 [shape = 's32[2]{0}', space=sflag, size = 0x8, scoped, tag = 'scoped memory for tpu_custom_call.1']
    %10 = vsyncpa [#allocation3], 0
    %s11 = scalar_lea.sflag [#allocation3], 1
    %12 = vsyncpa %s11, 0
    loop: start=0, step=1, limit=4
    $region2: #{tpu_custom_call.1} parent=1 // loop_pre_header
      _
    $region3: #{tpu_custom_call.1} parent=1 // loop_header
      %s14 = sphi 0, %s18
      %p15 = scmp.ge.s32.totalorder %s14, 4
      %s24 = sphi 0, %s26
      %s27 = sphi 0, %s24
      %s28 = sphi 0, %s27
      %s44 = sphi 0, %s28
      %s48 = sphi 0, %s48
      %s50 = sphi 0, %s48
      %s51 = sphi 0, %s50
      %s65 = sphi 0, %s51
      %s69 = sphi 0, %s69
      %s71 = sphi 0, %s69
      %s72 = sphi 0, %s71
      %s86 = sphi 0, %s72
      %s90 = sphi 0, %s90
      %s92 = sphi 0, %s90
      %s93 = sphi 0, %s92
      %s107 = sphi 0, %s93
      %s111 = sphi 0, %s111
      %s113 = sphi 0, %s111
      %s114 = sphi 0, %s113
      %s128 = sphi 0, %s114
      %s134 = sphi 0, %s136
      %s137 = sphi 0, %s134
      %s138 = sphi 0, %s137
      %s154 = sphi 0, %s138
    $region4: #{tpu_custom_call.1} parent=1 // loop_header_branch
      %17 = sbr.rel (%p15) target = $region8
    $region5: #{tpu_custom_call.1} parent=1 // loop_body
      %s19 = ssub.s32 %s14, 1
      %s20 = ssub.s32 %s14, 2
      %s21 = sadd.s32 %s14, 1
      %s22 = ssub.s32 %s14, %s21
      %p23 = scmp.eq.s32.totalorder %s22, 0
      %s25 = sadd.s32 %s24, 1
      %s26 = scalar_select %p23, %s24, %s25
      %p29 = pneg %p23
      %p30 = scmp.eq.s32.totalorder %s14, 1
      %p31 = por %p29, %p30
      %p32 = scmp.ne.s32.totalorder %s24, %s27
      %p33 = scmp.eq.s32.totalorder %s14, 0
      %p34 = por %p32, %p33
      %p35 = scmp.ne.s32.totalorder %s24, %s27
      %p36 = scmp.eq.s32.totalorder %s19, 1
      %p37 = por %p35, %p36
      %p38 = scmp.ne.s32.totalorder %s27, %s28
      %p39 = scmp.eq.s32.totalorder %s19, 0
      %p40 = por %p38, %p39
      %p41 = scmp.ne.s32.totalorder %s27, %s28
      %p42 = scmp.eq.s32.totalorder %s20, 1
      %p43 = por %p41, %p42
      %p45 = scmp.ne.s32.totalorder %s28, %s44
      %p46 = scmp.eq.s32.totalorder %s20, 0
      %p47 = por %p45, %p46
      %s49 = sadd.s32 %s48, 1
      %p52 = scmp.eq.s32.totalorder %s14, 1
      %p53 = scmp.ne.s32.totalorder %s48, %s50
      %p54 = scmp.eq.s32.totalorder %s14, 0
      %p55 = por %p53, %p54
      %p56 = scmp.ne.s32.totalorder %s48, %s50
      %p57 = scmp.eq.s32.totalorder %s19, 1
      %p58 = por %p56, %p57
      %p59 = scmp.ne.s32.totalorder %s50, %s51
      %p60 = scmp.eq.s32.totalorder %s19, 0
      %p61 = por %p59, %p60
      %p62 = scmp.ne.s32.totalorder %s50, %s51
      %p63 = scmp.eq.s32.totalorder %s20, 1
      %p64 = por %p62, %p63
      %p66 = scmp.ne.s32.totalorder %s51, %s65
      %p67 = scmp.eq.s32.totalorder %s20, 0
      %p68 = por %p66, %p67
      %s70 = sadd.s32 %s69, 1
      %p73 = scmp.eq.s32.totalorder %s14, 1
      %p74 = scmp.ne.s32.totalorder %s69, %s71
      %p75 = scmp.eq.s32.totalorder %s14, 0
      %p76 = por %p74, %p75
      %p77 = scmp.ne.s32.totalorder %s69, %s71
      %p78 = scmp.eq.s32.totalorder %s19, 1
      %p79 = por %p77, %p78
      %p80 = scmp.ne.s32.totalorder %s71, %s72
      %p81 = scmp.eq.s32.totalorder %s19, 0
      %p82 = por %p80, %p81
      %p83 = scmp.ne.s32.totalorder %s71, %s72
      %p84 = scmp.eq.s32.totalorder %s20, 1
      %p85 = por %p83, %p84
      %p87 = scmp.ne.s32.totalorder %s72, %s86
      %p88 = scmp.eq.s32.totalorder %s20, 0
      %p89 = por %p87, %p88
      %s91 = sadd.s32 %s90, 1
      %p94 = scmp.eq.s32.totalorder %s14, 1
      %p95 = scmp.ne.s32.totalorder %s90, %s92
      %p96 = scmp.eq.s32.totalorder %s14, 0
      %p97 = por %p95, %p96
      %p98 = scmp.ne.s32.totalorder %s90, %s92
      %p99 = scmp.eq.s32.totalorder %s19, 1
      %p100 = por %p98, %p99
      %p101 = scmp.ne.s32.totalorder %s92, %s93
      %p102 = scmp.eq.s32.totalorder %s19, 0
      %p103 = por %p101, %p102
      %p104 = scmp.ne.s32.totalorder %s92, %s93
      %p105 = scmp.eq.s32.totalorder %s20, 1
      %p106 = por %p104, %p105
      %p108 = scmp.ne.s32.totalorder %s93, %s107
      %p109 = scmp.eq.s32.totalorder %s20, 0
      %p110 = por %p108, %p109
      %s112 = sadd.s32 %s111, 1
      %p115 = scmp.eq.s32.totalorder %s14, 1
      %p116 = scmp.ne.s32.totalorder %s111, %s113
      %p117 = scmp.eq.s32.totalorder %s14, 0
      %p118 = por %p116, %p117
      %p119 = scmp.ne.s32.totalorder %s111, %s113
      %p120 = scmp.eq.s32.totalorder %s19, 1
      %p121 = por %p119, %p120
      %p122 = scmp.ne.s32.totalorder %s113, %s114
      %p123 = scmp.eq.s32.totalorder %s19, 0
      %p124 = por %p122, %p123
      %p125 = scmp.ne.s32.totalorder %s113, %s114
      %p126 = scmp.eq.s32.totalorder %s20, 1
      %p127 = por %p125, %p126
      %p129 = scmp.ne.s32.totalorder %s114, %s128
      %p130 = scmp.eq.s32.totalorder %s20, 0
      %p131 = por %p129, %p130
      %s132 = ssub.s32 %s14, %s21
      %p133 = scmp.eq.s32.totalorder %s132, 0
      %s135 = sadd.s32 %s134, 1
      %s136 = scalar_select %p133, %s134, %s135
      %p139 = pneg %p133
      %p140 = scmp.eq.s32.totalorder %s14, 1
      %p141 = por %p139, %p140
      %p142 = scmp.ne.s32.totalorder %s134, %s137
      %p143 = scmp.eq.s32.totalorder %s14, 0
      %p144 = por %p142, %p143
      %p145 = scmp.ne.s32.totalorder %s134, %s137
      %p146 = scmp.eq.s32.totalorder %s19, 1
      %p147 = por %p145, %p146
      %p148 = scmp.ne.s32.totalorder %s137, %s138
      %p149 = scmp.eq.s32.totalorder %s19, 0
      %p150 = por %p148, %p149
      %p151 = scmp.ne.s32.totalorder %s137, %s138
      %p152 = scmp.eq.s32.totalorder %s20, 1
      %p153 = por %p151, %p152
      %p155 = scmp.ne.s32.totalorder %s138, %s154
      %p156 = scmp.eq.s32.totalorder %s20, 0
      %p157 = por %p155, %p156
      %p158 = scmp.le.s32.totalorder 1, %s14
      %p159 = scmp.lt.s32.totalorder %s14, 3
      %p160 = pnand %p158, %p159
      %p161 = pneg %p160
      // Predicated region
      $region9: #{tpu_custom_call.1} parent=5 // pred_check
        _
      $region10: #{tpu_custom_call.1} parent=5 // pred_check_branch
        %163 = sbr.rel (%p160) target = $region12
      $region11: #{tpu_custom_call.1} parent=5 // pred_region
        %s164 = ssub.s32 %s14, 1
        // Predicated region
        $region13: #{tpu_custom_call.1} parent=11 // pred_check
          %p165 = pneg %p61
        $region14: #{tpu_custom_call.1} parent=11 // pred_check_branch
          %167 = sbr.rel (%p165) target = $region16
        $region15: #{tpu_custom_call.1} parent=11 // pred_region
          _
        $region16: #{tpu_custom_call.1} parent=11 // pred_fallthru
          _
        // Predicated region
        $region17: #{tpu_custom_call.1} parent=11 // pred_check
          %p168 = pneg %p82
        $region18: #{tpu_custom_call.1} parent=11 // pred_check_branch
          %170 = sbr.rel (%p168) target = $region20
        $region19: #{tpu_custom_call.1} parent=11 // pred_region
          _
        $region20: #{tpu_custom_call.1} parent=11 // pred_fallthru
          _
        // Predicated region
        $region21: #{tpu_custom_call.1} parent=11 // pred_check
          %p171 = pneg %p103
        $region22: #{tpu_custom_call.1} parent=11 // pred_check_branch
          %173 = sbr.rel (%p171) target = $region24
        $region23: #{tpu_custom_call.1} parent=11 // pred_region
          _
        $region24: #{tpu_custom_call.1} parent=11 // pred_fallthru
          _
        // Predicated region
        $region25: #{tpu_custom_call.1} parent=11 // pred_check
          %p174 = pneg %p124
        $region26: #{tpu_custom_call.1} parent=11 // pred_check_branch
          %176 = sbr.rel (%p174) target = $region28
        $region27: #{tpu_custom_call.1} parent=11 // pred_region
          _
        $region28: #{tpu_custom_call.1} parent=11 // pred_fallthru
          _
      $region12: #{tpu_custom_call.1} parent=5 // pred_fallthru
        _
      %p177 = scmp.lt.s32.totalorder %s14, 2
      // Predicated region
      $region29: #{tpu_custom_call.1} parent=5 // pred_check
        %p178 = pneg %p177
      $region30: #{tpu_custom_call.1} parent=5 // pred_check_branch
        %180 = sbr.rel (%p178) target = $region32
      $region31: #{tpu_custom_call.1} parent=5 // pred_region
        // Predicated region
        $region33: #{tpu_custom_call.1} parent=31 // pred_check
          %p181 = pneg %p34
        $region34: #{tpu_custom_call.1} parent=31 // pred_check_branch
          %183 = sbr.rel (%p181) target = $region36
        $region35: #{tpu_custom_call.1} parent=31 // pred_region
          %p184 = scmp.lt.s32.totalorder %s14, 1
          %s185 = scalar_select %p184, %s14, 1
          %s186 = smul.addr %s185, 8
          %s187 = scalar_lea.vmem %s0, %s186
        $region36: #{tpu_custom_call.1} parent=31 // pred_fallthru
          _
      $region32: #{tpu_custom_call.1} parent=5 // pred_fallthru
        _
      %p188 = scmp.le.s32.totalorder 1, %s14
      %p189 = scmp.lt.s32.totalorder %s14, 3
      %p190 = pnand %p188, %p189
      %p191 = pneg %p190
      // Predicated region
      $region37: #{tpu_custom_call.1} parent=5 // pred_check
        _
      $region38: #{tpu_custom_call.1} parent=5 // pred_check_branch
        %193 = sbr.rel (%p190) target = $region40
      $region39: #{tpu_custom_call.1} parent=5 // pred_region
        %s194 = ssub.s32 %s14, 1
        %p195 = scmp.lt.s32.totalorder %s19, 1
        %s196 = scalar_select %p195, %s19, 1
        %s197 = smul.addr %s196, 8
        %s198 = scalar_lea.vmem %s0, %s197
        %p199 = pneg %p40
        %p200 = pneg %p37
        %p201 = pneg %p61
        %p202 = pneg %p58
        %p203 = pneg %p82
        %p204 = pneg %p79
        %p205 = pneg %p103
        %p206 = pneg %p100
        %p207 = pneg %p124
        %p208 = pneg %p121
        %p209 = pneg %p150
        %p210 = pneg %p147
        %s211 = sand.u32 %s137, 1
        %s212 = scalar_lea.sflag [#allocation3], %s211
        %s213 = sand.u32 %s137, 1
        %s214 = smul.addr %s213, 8
        %s215 = scalar_lea.vmem [#allocation2], %s214
        %p216 = scmp.lt.s32.totalorder %s19, 1
        %s217 = scalar_select %p216, %s19, 1
        %s218 = smul.addr %s217, 8
        %s219 = scalar_lea.vmem %s0, %s218
        %v220 = vld [vmem:[%s219] sm:$0xff]
        %v221 = vld [vmem:[%s1] sm:$0xff]
        %v222 = vld [vmem:[%s1 + $0x8] sm:$0xff]
        %v223 = vld [vmem:[%s1 + $0x10] sm:$0xff]
        %v224 = vld [vmem:[%s1 + $0x18] sm:$0xff]
        %v225 = vld [vmem:[%s2] sm:$0x1]
        %v227 = vlaneseq
        %v228 = vshrl.u32 %v227, 7
        %v229 = vsub.s32 0, %v228
        %v230 = vrot.slane %v225, %v229
        %vm232 = vcmask 261120
        %v234 = vsel %vm232, %v220, 0
        %236 = vmatprep.subr.mxu0 0.0
        %237 = vmatpush1.msra.mxu0 0.0
        %238 = vmatprep.subr.mxu0 0.0
        %239 = vmatpush1.msra.mxu0 0.0
        %240 = vmatprep.subr.mxu0 0.0
        %241 = vmatpush1.msra.mxu0 0.0
        %242 = vmatprep.subr.mxu0 0.0
        %243 = vmatpush1.msra.mxu0 0.0
        %244 = vmatprep.subr.mxu0 0.0
        %245 = vmatpush1.msra.mxu0 0.0
        %246 = vmatprep.subr.mxu0 0.0
        %247 = vmatpush1.msra.mxu0 0.0
        %248 = vmatprep.subr.mxu0 0.0
        %249 = vmatpush1.msra.mxu0 0.0
        %250 = vmatprep.subr.mxu0 0.0
        %251 = vmatpush1.msra.mxu0 0.0
        %252 = vmatprep.subr.mxu0 0.0
        %253 = vmatpush1.msra.mxu0 0.0
        %254 = vmatprep.subr.mxu0 0.0
        %255 = vmatpush1.msra.mxu0 0.0
        %256 = vmatprep.subr.mxu0 0.0
        %257 = vmatpush1.msra.mxu0 0.0
        %258 = vmatprep.subr.mxu0 0.0
        %259 = vmatpush1.msra.mxu0 0.0
        %260 = vmatprep.subr.mxu0 0.0
        %261 = vmatpush1.msra.mxu0 %v224
        %262 = vmatprep.subr.mxu0 0.0
        %263 = vmatpush1.msra.mxu0 %v223
        %264 = vmatprep.subr.mxu0 0.0
        %265 = vmatpush1.msra.mxu0 %v222
        %266 = vmatprep.subr.mxu0 0.0
        %267 = vmatpush1.msra.mxu0 %v221
        %268 = vmatprep.subr.mxu0 0.0
        %269 = vmatpush2.msra.mxu0 0.0
        %270 = vmatprep.subr.mxu0 0.0
        %271 = vmatpush2.msra.mxu0 0.0
        %272 = vmatprep.subr.mxu0 0.0
        %273 = vmatpush2.msra.mxu0 0.0
        %274 = vmatprep.subr.mxu0 0.0
        %275 = vmatpush2.msra.mxu0 0.0
        %276 = vmatprep.subr.mxu0 0.0
        %277 = vmatpush2.msra.mxu0 0.0
        %278 = vmatprep.subr.mxu0 0.0
        %279 = vmatpush2.msra.mxu0 0.0
        %280 = vmatprep.subr.mxu0 0.0
        %281 = vmatpush2.msra.mxu0 0.0
        %282 = vmatprep.subr.mxu0 0.0
        %283 = vmatpush2.msra.mxu0 0.0
        %284 = vmatprep.subr.mxu0 0.0
        %285 = vmatpush2.msra.mxu0 0.0
        %286 = vmatprep.subr.mxu0 0.0
        %287 = vmatpush2.msra.mxu0 0.0
        %288 = vmatprep.subr.mxu0 0.0
        %289 = vmatpush2.msra.mxu0 0.0
        %290 = vmatprep.subr.mxu0 0.0
        %291 = vmatpush2.msra.mxu0 0.0
        %292 = vmatprep.subr.mxu0 0.0
        %293 = vmatpush2.msra.mxu0 0.0
        %294 = vmatprep.subr.mxu0 0.0
        %295 = vmatpush2.msra.mxu0 0.0
        %296 = vmatprep.subr.mxu0 0.0
        %297 = vmatpush2.msra.mxu0 0.0
        %298 = vmatprep.subr.mxu0 0.0
        %299 = vmatpush2.msra.mxu0 0.0
        %300 = vmatprep.mubr.f32.mxu0 0.0
        %301 = vmatmul.mubr.f32.gmra.mxu0 %v234
        %v302 = vpop.f32.mrf.mxu0
        %v303 = vadd.f32 %v230, %v302
        %v304 = vpop.f32.mrf.mxu0
        %305 = vdwg.mxu0
        %v306 = vmul.f32 %v303, 0.5
        %v307 = vmul.f32 %v303, 0.70710677
        %v308 = verf.f32.pop %v307
        %v309 = vadd.f32 %v308, 1.0
        %v310 = vmul.f32 %v306, %v309
        %v311 = vld [vmem:[%s3] sm:$0xff]
        %v312 = vld [vmem:[%s3 + $0x8] sm:$0xff]
        %v313 = vld [vmem:[%s3 + $0x10] sm:$0xff]
        %v314 = vld [vmem:[%s3 + $0x18] sm:$0xff]
        %v315 = vld [vmem:[%s3 + $0x20] sm:$0xff]
        %v316 = vld [vmem:[%s3 + $0x28] sm:$0xff]
        %v317 = vld [vmem:[%s3 + $0x30] sm:$0xff]
        %v318 = vld [vmem:[%s3 + $0x38] sm:$0xff]
        %v319 = vld [vmem:[%s3 + $0x40] sm:$0xff]
        %v320 = vld [vmem:[%s3 + $0x48] sm:$0xff]
        %v321 = vld [vmem:[%s3 + $0x50] sm:$0xff]
        %v322 = vld [vmem:[%s3 + $0x58] sm:$0xff]
        %v323 = vld [vmem:[%s3 + $0x60] sm:$0xff]
        %v324 = vld [vmem:[%s3 + $0x68] sm:$0xff]
        %v325 = vld [vmem:[%s3 + $0x70] sm:$0xff]
        %v326 = vld [vmem:[%s3 + $0x78] sm:$0xff]
        %v327 = vld [vmem:[%s4] sm:$0x1]
        %v329 = vlaneseq
        %v330 = vshrl.u32 %v329, 7
        %v331 = vsub.s32 0, %v330
        %v332 = vrot.slane %v327, %v331
        %334 = vmatprep.subr.mxu0 0.0
        %335 = vmatpush1.msra.mxu0 %v326
        %336 = vmatprep.subr.mxu0 0.0
        %337 = vmatpush1.msra.mxu0 %v325
        %338 = vmatprep.subr.mxu0 0.0
        %339 = vmatpush1.msra.mxu0 %v324
        %340 = vmatprep.subr.mxu0 0.0
        %341 = vmatpush1.msra.mxu0 %v323
        %342 = vmatprep.subr.mxu0 0.0
        %343 = vmatpush1.msra.mxu0 %v322
        %344 = vmatprep.subr.mxu0 0.0
        %345 = vmatpush1.msra.mxu0 %v321
        %346 = vmatprep.subr.mxu0 0.0
        %347 = vmatpush1.msra.mxu0 %v320
        %348 = vmatprep.subr.mxu0 0.0
        %349 = vmatpush1.msra.mxu0 %v319
        %350 = vmatprep.subr.mxu0 0.0
        %351 = vmatpush1.msra.mxu0 %v318
        %352 = vmatprep.subr.mxu0 0.0
        %353 = vmatpush1.msra.mxu0 %v317
        %354 = vmatprep.subr.mxu0 0.0
        %355 = vmatpush1.msra.mxu0 %v316
        %356 = vmatprep.subr.mxu0 0.0
        %357 = vmatpush1.msra.mxu0 %v315
        %358 = vmatprep.subr.mxu0 0.0
        %359 = vmatpush1.msra.mxu0 %v314
        %360 = vmatprep.subr.mxu0 0.0
        %361 = vmatpush1.msra.mxu0 %v313
        %362 = vmatprep.subr.mxu0 0.0
        %363 = vmatpush1.msra.mxu0 %v312
        %364 = vmatprep.subr.mxu0 0.0
        %365 = vmatpush1.msra.mxu0 %v311
        %366 = vmatprep.subr.mxu0 0.0
        %367 = vmatpush2.msra.mxu0 0.0
        %368 = vmatprep.subr.mxu0 0.0
        %369 = vmatpush2.msra.mxu0 0.0
        %370 = vmatprep.subr.mxu0 0.0
        %371 = vmatpush2.msra.mxu0 0.0
        %372 = vmatprep.subr.mxu0 0.0
        %373 = vmatpush2.msra.mxu0 0.0
        %374 = vmatprep.subr.mxu0 0.0
        %375 = vmatpush2.msra.mxu0 0.0
        %376 = vmatprep.subr.mxu0 0.0
        %377 = vmatpush2.msra.mxu0 0.0
        %378 = vmatprep.subr.mxu0 0.0
        %379 = vmatpush2.msra.mxu0 0.0
        %380 = vmatprep.subr.mxu0 0.0
        %381 = vmatpush2.msra.mxu0 0.0
        %382 = vmatprep.subr.mxu0 0.0
        %383 = vmatpush2.msra.mxu0 0.0
        %384 = vmatprep.subr.mxu0 0.0
        %385 = vmatpush2.msra.mxu0 0.0
        %386 = vmatprep.subr.mxu0 0.0
        %387 = vmatpush2.msra.mxu0 0.0
        %388 = vmatprep.subr.mxu0 0.0
        %389 = vmatpush2.msra.mxu0 0.0
        %390 = vmatprep.subr.mxu0 0.0
        %391 = vmatpush2.msra.mxu0 0.0
        %392 = vmatprep.subr.mxu0 0.0
        %393 = vmatpush2.msra.mxu0 0.0
        %394 = vmatprep.subr.mxu0 0.0
        %395 = vmatpush2.msra.mxu0 0.0
        %396 = vmatprep.subr.mxu0 0.0
        %397 = vmatpush2.msra.mxu0 0.0
        %398 = vmatprep.mubr.f32.mxu0 0.0
        %399 = vmatmul.mubr.f32.gmra.mxu0 %v310
        %v400 = vpop.f32.mrf.mxu0
        %v401 = vadd.f32 %v332, %v400
        %v402 = vpop.f32.mrf.mxu0
        %403 = vdwg.mxu0
        %404 = vst.msk [vmem:[%s215] sm:$0xff] %vm232, %v401
        %s405 = sand.u32 %s137, 1
        %s406 = scalar_lea.sflag [#allocation3], %s405
        %s407 = sand.u32 %s137, 1
        %s408 = smul.addr %s407, 8
        %s409 = scalar_lea.vmem [#allocation2], %s408
        // Predicated region
        $region41: #{tpu_custom_call.1} parent=39 // pred_check
          %p410 = pneg %p147
        $region42: #{tpu_custom_call.1} parent=39 // pred_check_branch
          %412 = sbr.rel (%p410) target = $region44
        $region43: #{tpu_custom_call.1} parent=39 // pred_region
          %s414 = ssub.s32 128, 128
          %415 = vsyncadd %s406, %s414
          %s416 = smul.addr %s19, 128
          %s417 = scalar_lea.hbm %s5, %s416
          %s419 = sshll.u32 %s409, 4
          %s420 = int_to_ptr.vmem [resolvable:$true] %s419
          %422 = dma.vmem_to_hbm [thread:$0]  %s420, 128, %s417, %s406
        $region44: #{tpu_custom_call.1} parent=39 // pred_fallthru
          _
      $region40: #{tpu_custom_call.1} parent=5 // pred_fallthru
        _
      %p423 = scmp.le.s32.totalorder 2, %s14
      // Predicated region
      $region45: #{tpu_custom_call.1} parent=5 // pred_check
        %p424 = pneg %p423
      $region46: #{tpu_custom_call.1} parent=5 // pred_check_branch
        %426 = sbr.rel (%p424) target = $region48
      $region47: #{tpu_custom_call.1} parent=5 // pred_region
        %s427 = ssub.s32 %s14, 2
        // Predicated region
        $region49: #{tpu_custom_call.1} parent=47 // pred_check
          %p428 = pneg %p153
        $region50: #{tpu_custom_call.1} parent=47 // pred_check_branch
          %430 = sbr.rel (%p428) target = $region52
        $region51: #{tpu_custom_call.1} parent=47 // pred_region
          %s431 = sand.u32 %s138, 1
          %s432 = scalar_lea.sflag [#allocation3], %s431
          %s433 = sand.u32 %s138, 1
          %s434 = smul.addr %s433, 8
          %s435 = scalar_lea.vmem [#allocation2], %s434
          %436 = dma.done %s432, 128
        $region52: #{tpu_custom_call.1} parent=47 // pred_fallthru
          _
      $region48: #{tpu_custom_call.1} parent=5 // pred_fallthru
        _
    $region6: #{tpu_custom_call.1} parent=1 // loop_footer
      %s18 = sadd.s32 1, %s14
    $region7: #{tpu_custom_call.1} parent=1 // loop_footer_branch
      %13 = sbr.rel target = $region3
    $region8: #{tpu_custom_call.1} parent=1 // loop_exit
      _
    %437 = vsyncpa [#allocation3], 1
    %s438 = scalar_lea.sflag [#allocation3], 1
    %439 = vsyncpa %s438, 1

</llo_original>
